<compile_context>
chip_gen: v5e
topology: v5e:2x2
jax: 0.10.0
libtpu: 0.0.40
codegen_flags: <defaults>
</compile_context>

<pallas_src>
import numpy as np
import jax
import jax.numpy as jnp
from jax.experimental import pallas as pl
from jax.experimental.pallas import tpu as pltpu


def _round_up(x, m):
    return ((x + m - 1) // m) * m


def _device_kind():
    try:
        return jax.devices()[0].device_kind.lower()
    except Exception:
        return ""


def _vmem_capacity_bytes(default):
    try:
        return int(pltpu.get_tpu_info().vmem_capacity_bytes)
    except Exception:
        return default


# Narrow set of lowering/compile-type errors that trigger the feature-probe
# fallback (same layout, same math; only gather method / buffer count change).
_FALLBACK_ERRORS = tuple(
    e for e in (getattr(pltpu, "LoweringException", None),
                getattr(getattr(jax, "errors", None), "JaxRuntimeError", None),
                NotImplementedError, ValueError, TypeError, RuntimeError)
    if e is not None)


# --------------------------------------------------------------------------
# One-time parameter preparation: transpose / pad / fold r,z biases / cast the
# streamed matmul weights to bf16.  Padded vocab slots get a -1e30 bias so the
# softmax / argmax ignore them.
# --------------------------------------------------------------------------
def prepare_decoder_params(params, weight_dtype=jnp.bfloat16):
    emb = jnp.asarray(params["embedding"], jnp.float32)   # (V, E)
    w_ih = jnp.asarray(params["w_ih"], jnp.float32)       # (3H, E)  [r; z; n]
    w_hh = jnp.asarray(params["w_hh"], jnp.float32)       # (3H, H)
    b_ih = jnp.asarray(params["b_ih"], jnp.float32)       # (3H,)
    b_hh = jnp.asarray(params["b_hh"], jnp.float32)       # (3H,)
    w_lin = jnp.asarray(params["w_lin"], jnp.float32)     # (V, H)
    b_lin = jnp.asarray(params["b_lin"], jnp.float32)     # (V,)

    V, E = emb.shape
    H = w_hh.shape[1]
    Vp = _round_up(V, 128)
    Ep = _round_up(E, 128)
    Hp = _round_up(H, 128)

    def pad2(a, r, c):
        return jnp.pad(a, ((0, r - a.shape[0]), (0, c - a.shape[1])))

    def pad1(a, n):
        return jnp.pad(a, (0, n - a.shape[0]))

    # Embedding stays f32: with the in-kernel row gather it is no longer
    # streamed through the MXU every step, and f32 rows keep the dynamic
    # per-row loads on the plain (8,128) layout path.
    # TODO(synk): cast emb to bf16 (or fp8 on v7x) for VMEM residency once
    # packed-dtype dynamic sublane slices are validated on the target build.
    emb_p = pad2(emb, Vp, Ep)                               # (Vp, Ep) f32

    # Pad each gate block separately so the [r; z; n] layout survives padding.
    wih_r, wih_z, wih_n = jnp.split(w_ih, 3, axis=0)
    whh_r, whh_z, whh_n = jnp.split(w_hh, 3, axis=0)
    bih_r, bih_z, bih_n = jnp.split(b_ih, 3)
    bhh_r, bhh_z, bhh_n = jnp.split(b_hh, 3)

    wih_p = jnp.concatenate([pad2(g, Hp, Ep) for g in (wih_r, wih_z, wih_n)], 0)
    whh_p = jnp.concatenate([pad2(g, Hp, Hp) for g in (whh_r, whh_z, whh_n)], 0)

    # Fold b_ih + b_hh for r/z; keep the n-gate hidden bias separate
    # (torch: n = tanh(W_in x + b_in + r * (W_hn h + b_hn))).
    bias_i = jnp.concatenate([pad1(bih_r + bhh_r, Hp),
                              pad1(bih_z + bhh_z, Hp),
                              pad1(bih_n, Hp)])             # (3Hp,) f32
    bias_hn = pad1(bhh_n, Hp)                               # (Hp,)  f32

    wlin_p = pad2(w_lin, Vp, Hp)                            # (Vp, Hp)
    blin_p = jnp.concatenate(
        [b_lin, jnp.full((Vp - V,), -1e30, jnp.float32)])   # f32; pads masked

    return {
        "emb": emb_p,                                  # (Vp, Ep)  f32 (gathered)
        "w_ih_t": wih_p.T.astype(weight_dtype),        # (Ep, 3Hp) bf16
        "w_hh_t": whh_p.T.astype(weight_dtype),        # (Hp, 3Hp) bf16
        "bias_i": bias_i[None, :],                     # (1, 3Hp)  f32
        "bias_hn": bias_hn[None, :],                   # (1, Hp)   f32
        "w_lin_t": wlin_p.T.astype(weight_dtype),      # (Hp, Vp)  bf16
        "b_lin": blin_p[None, :],                      # (1, Vp)   f32
        "dims": (V, E, H, Vp, Ep, Hp),
    }


# --------------------------------------------------------------------------
# Kernel: one grid step = one (batch block, time chunk); Tc GRU steps via a
# lax.fori_loop; recurrent carries persist in VMEM scratch across chunks.
# --------------------------------------------------------------------------
def _make_kernel(use_row_gather, Tc, Hp, Vp):
    def kernel(x0_ref, h0_ref, emb_ref, wih_ref, whh_ref,
               bias_i_ref, bias_hn_ref, wlin_ref, blin_ref,
               out_ref, x_sc, h_sc, idx_sc):
        c = pl.program_id(1)                      # time-chunk index (innermost)

        @pl.when(c == 0)
        def _():                                  # (re)initialize the carry
            x_sc[...] = x0_ref[...]
            h_sc[...] = h0_ref[...]

        # Loop-invariant loads / broadcasts hoisted out of the time loop.
        bias_i = bias_i_ref[...]                  # (1, 3Hp) f32
        bias_hn = bias_hn_ref[...]                # (1, Hp)  f32
        b_lin = blin_ref[...]                     # (1, Vp)  f32
        Bb = x_sc.shape[0]
        Ep = x_sc.shape[1]
        lane_iota = jax.lax.broadcasted_iota(jnp.int32, (Bb, Vp), 1)
        sub_iota = jax.lax.broadcasted_iota(jnp.int32, (8, Ep), 0)
        mm_dt = wih_ref.dtype                     # bf16 MXU operand dtype

        def step(t, carry):
            x, h = carry                          # (Bb, Ep) f32, (Bb, Hp) f32

            # --- GRU cell (PyTorch gate order r, z, n; r/z biases pre-folded);
            #     bf16 MXU operands, f32 accumulate / gate math / h carry. ---
            # TODO(synk): hold W_hh in MXU weight registers across the chunk
            # via pltpu.matmul_push_rhs/acc_lhs/pop for small-M decode.
            gi = jnp.dot(x.astype(mm_dt), wih_ref[...],
                         preferred_element_type=jnp.float32) + bias_i
            gh = jnp.dot(h.astype(mm_dt), whh_ref[...],
                         preferred_element_type=jnp.float32)
            rz = jax.nn.sigmoid(gi[:, :2 * Hp] + gh[:, :2 * Hp])
            r = rz[:, :Hp]
            z = rz[:, Hp:]
            n = jnp.tanh(gi[:, 2 * Hp:] + r * (gh[:, 2 * Hp:] + bias_hn))
            h_new = (1.0 - z) * n + z * h

            # --- Linear (bf16 weights, f32 accumulate, f32 bias) ---
            logits = jnp.dot(h_new.astype(mm_dt), wlin_ref[...],
                             preferred_element_type=jnp.float32) + b_lin
            m = jnp.max(logits, axis=-1, keepdims=True)

            # Greedy next token straight from the logits (first-max tie-break),
            # clamped in-bounds so padded/degenerate rows can never index OOB.
            idx = jnp.min(jnp.where(logits == m, lane_iota, Vp),
                          axis=-1, keepdims=True)
            idx = jnp.minimum(idx, Vp - 1)                        # (Bb, 1) i32

            if use_row_gather:
                # True row gather: per-row scalar index -> 8-aligned dynamic
                # (8, Ep) load + sublane select.  Reads Bb*Ep elements per
                # step instead of streaming the whole (Vp, Ep) table.
                idx_sc[...] = idx
                rows = []
                for b in range(Bb):                               # static, Bb<=16
                    tok = idx_sc[b, 0]                            # scalar index
                    base = pl.multiple_of((tok // 8) * 8, 8)      # aligned block
                    blk = emb_ref[pl.ds(base, 8), :]              # (8, Ep) f32
                    rows.append(jnp.sum(
                        jnp.where(sub_iota == (tok - base), blk, 0.0),
                        axis=0, keepdims=True))                   # (1, Ep)
                x_new = jnp.maximum(jnp.concatenate(rows, axis=0), 0.0)
            else:
                # Fallback: one-hot MXU "gather" (streams the full table).
                onehot = (lane_iota == idx).astype(jnp.float32)
                x_new = jnp.maximum(
                    jnp.dot(onehot, emb_ref[...],
                            preferred_element_type=jnp.float32), 0.0)

            # --- LogSoftmax (feeds only the output write) ---
            shifted = logits - m
            lse = jnp.log(jnp.sum(jnp.exp(shifted), axis=-1, keepdims=True))
            logprob = shifted - lse                               # (Bb, Vp) f32

            # Sublane/lane-dense (Bb, Vp) slab store into the time-major block.
            out_ref[pl.ds(t, 1), :, :] = logprob[None].astype(out_ref.dtype)
            return (x_new, h_new)

        # fori_loop bounds the live set (vs. a 16x Python unroll); the
        # recurrence is serial anyway.  (unroll=2/4 is an optional knob.)
        x_fin, h_fin = jax.lax.fori_loop(0, Tc, step, (x_sc[...], h_sc[...]))
        x_sc[...] = x_fin
        h_sc[...] = h_fin

    return kernel


# --------------------------------------------------------------------------
# Wrapper
# --------------------------------------------------------------------------
def decoder_forward(label, init_hidden, prepped, out_dtype=jnp.float32):
    """label: (B, T) int32; init_hidden: (1, B, H) f32 -> (B, T, V) log-probs.

    Pass out_dtype=jnp.bfloat16 to halve the dominant (B, T, V) HBM writeback;
    the default f32 matches the PyTorch reference output dtype.
    """
    V, E, H, Vp, Ep, Hp = prepped["dims"]
    B, T = label.shape
    Bp = _round_up(B, 8)

    # Glue: x_0 = relu(Embedding(label[:, 0])), h_0 = init_hidden[0]; pad to
    # sublane/lane-dense shapes (padded rows/cols are zero, sliced off below).
    tok0 = label[:, 0].astype(jnp.int32)
    x0 = jnp.maximum(jnp.take(prepped["emb"], tok0, axis=0), 0.0)   # (B, Ep)
    x0 = jnp.pad(x0, ((0, Bp - B), (0, 0)))                         # (Bp, Ep)
    h0 = jnp.pad(init_hidden[0].astype(jnp.float32),
                 ((0, Bp - B), (0, Hp - H)))                        # (Bp, Hp)

    # ---- generation-aware launch parameters --------------------------------
    kind = _device_kind()
    is_v7x = ("v7" in kind) or ("7x" in kind)
    # Batch split across TensorCores only helps on v7x (2 TCs/chip); on
    # v5e/v6e it would just serialize the recurrence twice.
    nb = 2 if (is_v7x and Bp >= 16 and Bp % 16 == 0) else 1
    Bb = Bp // nb
    # TODO(synk): on v7x with production V, split the *vocab* across the two
    # cores (half of W_lin/emb per core + CMEM combine) or quantize to fp8.

    # Stay well below physical VMEM (64 MiB/TC on v7x, 128 MiB on v5e/v6e).
    vmem_cap = _vmem_capacity_bytes(default=(64 if is_v7x else 128) * 2**20)
    vmem_limit = max(32 * 2**20, min((vmem_cap * 4) // 5, 100 * 2**20))

    # Time chunking: big enough to amortize the ~0.35us/grid-step overhead,
    # small enough that the double-buffered (Tc, Bb, Vp) output block <~8 MiB.
    out_itemsize = int(np.dtype(out_dtype).itemsize)
    tc_cap = max(1, (8 * 2**20) // (Bb * Vp * out_itemsize))
    tc_max = max(1, min(T, 16, tc_cap))
    n_chunks = -(-T // tc_max)
    Tc = -(-T // n_chunks)
    Tp = n_chunks * Tc

    args = (x0, h0, prepped["emb"], prepped["w_ih_t"], prepped["w_hh_t"],
            prepped["bias_i"], prepped["bias_hn"],
            prepped["w_lin_t"], prepped["b_lin"])

    # Advisory cost estimate so XLA schedules around a long sequential kernel.
    weight_bytes = sum(int(v.size) * v.dtype.itemsize
                       for k, v in prepped.items() if k != "dims")
    flops = 2 * Bp * Tp * (Ep * 3 * Hp + Hp * 3 * Hp + Hp * Vp)
    transcendentals = Bp * Tp * (3 * Hp + Vp + 1)
    bytes_accessed = int(weight_bytes + Tp * Bp * Vp * out_itemsize
                         + x0.size * 4 + h0.size * 4)
    cost = pl.CostEstimate(flops=int(flops),
                           transcendentals=int(transcendentals),
                           bytes_accessed=bytes_accessed)

    def run(use_row_gather, single_buffer):
        kernel = _make_kernel(use_row_gather, Tc, Hp, Vp)

        def spec(shape, index_map):
            if single_buffer:
                # Grid/time-invariant operands: one VMEM buffer is enough.
                return pl.BlockSpec(shape, index_map,
                                    pipeline_mode=pl.Buffered(1))
            return pl.BlockSpec(shape, index_map)

        def const_spec(shape):
            return spec(shape, lambda b, c, _nd=len(shape): (0,) * _nd)

        in_specs = [
            spec((Bb, Ep), lambda b, c: (b, 0)),      # x0  (time-invariant)
            spec((Bb, Hp), lambda b, c: (b, 0)),      # h0  (time-invariant)
            const_spec((Vp, Ep)),                     # embedding        (f32)
            const_spec((Ep, 3 * Hp)),                 # W_ih^T           (bf16)
            const_spec((Hp, 3 * Hp)),                 # W_hh^T           (bf16)
            const_spec((1, 3 * Hp)),                  # folded gate bias (f32)
            const_spec((1, Hp)),                      # n-gate hidden bias
            const_spec((Hp, Vp)),                     # W_lin^T          (bf16)
            const_spec((1, Vp)),                      # b_lin (pads = -1e30)
        ]
        # Time-major output: every per-step store is a dense (Bb, Vp) slab;
        # the (T, B) transpose is one cheap XLA op outside the kernel.
        out_shape = jax.ShapeDtypeStruct((Tp, Bp, Vp), out_dtype)
        out_specs = pl.BlockSpec((Tc, Bb, Vp), lambda b, c: (c, b, 0))

        out = pl.pallas_call(
            kernel,
            out_shape=out_shape,
            grid_spec=pltpu.PrefetchScalarGridSpec(
                num_scalar_prefetch=0,
                grid=(nb, n_chunks),
                in_specs=in_specs,
                out_specs=out_specs,
                scratch_shapes=[pltpu.VMEM((Bb, Ep), jnp.float32),   # x carry
                                pltpu.VMEM((Bb, Hp), jnp.float32),   # h carry
                                pltpu.VMEM((Bb, 1), jnp.int32)],     # argmax idx
            ),
            compiler_params=pltpu.CompilerParams(
                dimension_semantics=("parallel", "arbitrary"),
                vmem_limit_bytes=int(vmem_limit)),
            cost_estimate=cost,
        )(*args)
        return jax.block_until_ready(out)

    # Feature-probe fallback: identical layout & numerics-equivalent math;
    # only lowering/compile-type errors switch to the one-hot / default-buffer
    # configuration (which is the previously-validated path).
    try:
        out_p = run(use_row_gather=True, single_buffer=True)
    except _FALLBACK_ERRORS:
        out_p = run(use_row_gather=False, single_buffer=False)

    out_p = jnp.transpose(out_p, (1, 0, 2))          # (Tp,Bp,Vp) -> (Bp,Tp,Vp)
    return out_p[:B, :T, :V]                         # (B, T, V)


# TODO(synk): the teaching-force branch (python random.random() <= rate) and
# the optional Attention path (use_attn=True) are dead code with the module
# defaults (teaching_force_rate=0.0, use_attn=False) and are not implemented.

if __name__ == "__main__":
    key = jax.random.PRNGKey(0)
    B, T = 2, 8            # batch, seq_len
    E, H, V = 16, 32, 64   # emb_size, hidden_size, vocab_size

    ks = jax.random.split(key, 9)
    params = {
        "embedding": 0.1 * jax.random.normal(ks[0], (V, E), jnp.float32),
        "w_ih":      0.1 * jax.random.normal(ks[1], (3 * H, E), jnp.float32),
        "w_hh":      0.1 * jax.random.normal(ks[2], (3 * H, H), jnp.float32),
        "b_ih":      0.1 * jax.random.normal(ks[3], (3 * H,), jnp.float32),
        "b_hh":      0.1 * jax.random.normal(ks[4], (3 * H,), jnp.float32),
        "w_lin":     0.1 * jax.random.normal(ks[5], (V, H), jnp.float32),
        "b_lin":     0.1 * jax.random.normal(ks[6], (V,), jnp.float32),
    }
    label = jax.random.randint(ks[7], (B, T), 0, V, dtype=jnp.int32)
    init_hidden = 0.1 * jax.random.normal(ks[8], (1, B, H), jnp.float32)

    prepped = prepare_decoder_params(params)    # one-time transpose/pad/cast
    out = jax.block_until_ready(decoder_forward(label, init_hidden, prepped))
    assert out.shape == (B, T, V), out.shape
    assert bool(jnp.all(jnp.isfinite(out)))
    print("KERNEL_OK")
</pallas_src>

<mosaic_0001>
module attributes {stable_mosaic.version = 11 : i64} {
  func.func @kernel(%arg0: i32, %arg1: i32, %arg2: memref<8x128xf32, #tpu.memory_space<vmem>>, %arg3: memref<8x128xf32, #tpu.memory_space<vmem>>, %arg4: memref<128x128xf32, #tpu.memory_space<vmem>>, %arg5: memref<128x384xbf16, #tpu.memory_space<vmem>>, %arg6: memref<128x384xbf16, #tpu.memory_space<vmem>>, %arg7: memref<1x384xf32, #tpu.memory_space<vmem>>, %arg8: memref<1x128xf32, #tpu.memory_space<vmem>>, %arg9: memref<128x128xbf16, #tpu.memory_space<vmem>>, %arg10: memref<1x128xf32, #tpu.memory_space<vmem>>, %arg11: memref<8x8x128xf32, #tpu.memory_space<vmem>>, %arg12: memref<8x128xf32, #tpu.memory_space<vmem>>, %arg13: memref<8x128xf32, #tpu.memory_space<vmem>>, %arg14: memref<8x1xi32, #tpu.memory_space<vmem>>) attributes {dimension_semantics = [#tpu.dimension_semantics<parallel>, #tpu.dimension_semantics<arbitrary>], iteration_bounds = array<i64: 1, 1>, scalar_prefetch = 0 : i64, scratch_operands = 3 : i64, tpu.core_type = #tpu.core_type<tc>, window_params = [{transform_indices = @transform_0, window_bounds = array<i64: 8, 128>}, {transform_indices = @transform_1, window_bounds = array<i64: 8, 128>}, {pipeline_mode = #tpu.pipeline_mode<synchronous>, transform_indices = @transform_2, window_bounds = array<i64: 128, 128>}, {pipeline_mode = #tpu.pipeline_mode<synchronous>, transform_indices = @transform_3, window_bounds = array<i64: 128, 384>}, {pipeline_mode = #tpu.pipeline_mode<synchronous>, transform_indices = @transform_4, window_bounds = array<i64: 128, 384>}, {pipeline_mode = #tpu.pipeline_mode<synchronous>, transform_indices = @transform_5, window_bounds = array<i64: 1, 384>}, {pipeline_mode = #tpu.pipeline_mode<synchronous>, transform_indices = @transform_6, window_bounds = array<i64: 1, 128>}, {pipeline_mode = #tpu.pipeline_mode<synchronous>, transform_indices = @transform_7, window_bounds = array<i64: 128, 128>}, {pipeline_mode = #tpu.pipeline_mode<synchronous>, transform_indices = @transform_8, window_bounds = array<i64: 1, 128>}, {transform_indices = @transform_9, window_bounds = array<i64: 8, 8, 128>}]} {
    %c0_i32 = arith.constant 0 : i32
    %0 = arith.cmpi eq, %arg1, %c0_i32 : i32
    %1 = arith.extui %0 : i1 to i32
    %c0_i32_0 = arith.constant 0 : i32
    %2 = arith.cmpi ne, %1, %c0_i32_0 : i32
    scf.if %2 {
      %c0_16 = arith.constant 0 : index
      %c0_17 = arith.constant 0 : index
      %13 = vector.load %arg2[%c0_16, %c0_17] : memref<8x128xf32, #tpu.memory_space<vmem>>, vector<8x128xf32>
      %c0_18 = arith.constant 0 : index
      %c0_19 = arith.constant 0 : index
      %14 = vector.load %arg12[%c0_18, %c0_19] : memref<8x128xf32, #tpu.memory_space<vmem>>, vector<8x128xf32>
      tpu.vector_store %arg12[%c0_18, %c0_19], %13 {strides = array<i32>} : memref<8x128xf32, #tpu.memory_space<vmem>>, vector<8x128xf32>,
      %c0_20 = arith.constant 0 : index
      %c0_21 = arith.constant 0 : index
      %15 = vector.load %arg3[%c0_20, %c0_21] : memref<8x128xf32, #tpu.memory_space<vmem>>, vector<8x128xf32>
      %c0_22 = arith.constant 0 : index
      %c0_23 = arith.constant 0 : index
      %16 = vector.load %arg13[%c0_22, %c0_23] : memref<8x128xf32, #tpu.memory_space<vmem>>, vector<8x128xf32>
      tpu.vector_store %arg13[%c0_22, %c0_23], %15 {strides = array<i32>} : memref<8x128xf32, #tpu.memory_space<vmem>>, vector<8x128xf32>,
    } else {
    }
    %c0 = arith.constant 0 : index
    %c0_1 = arith.constant 0 : index
    %3 = vector.load %arg7[%c0, %c0_1] : memref<1x384xf32, #tpu.memory_space<vmem>>, vector<1x384xf32>
    %c0_2 = arith.constant 0 : index
    %c0_3 = arith.constant 0 : index
    %4 = vector.load %arg8[%c0_2, %c0_3] : memref<1x128xf32, #tpu.memory_space<vmem>>, vector<1x128xf32>
    %c0_4 = arith.constant 0 : index
    %c0_5 = arith.constant 0 : index
    %5 = vector.load %arg10[%c0_4, %c0_5] : memref<1x128xf32, #tpu.memory_space<vmem>>, vector<1x128xf32>
    %6 = tpu.iota {dimensions = array<i32: 1>} : vector<8x128xi32>
    %c0_6 = arith.constant 0 : index
    %c0_7 = arith.constant 0 : index
    %7 = vector.load %arg12[%c0_6, %c0_7] : memref<8x128xf32, #tpu.memory_space<vmem>>, vector<8x128xf32>
    %c0_8 = arith.constant 0 : index
    %c0_9 = arith.constant 0 : index
    %8 = vector.load %arg13[%c0_8, %c0_9] : memref<8x128xf32, #tpu.memory_space<vmem>>, vector<8x128xf32>
    %c0_i32_10 = arith.constant 0 : i32
    %c8_i32 = arith.constant 8 : i32
    %9 = arith.addi %c0_i32_10, %c8_i32 : i32
    %c1_i32 = arith.constant 1 : i32
    %10:2 = scf.for %arg15 = %c0_i32_10 to %9 step %c1_i32 iter_args(%arg16 = %7, %arg17 = %8) -> (vector<8x128xf32>, vector<8x128xf32>)  : i32 {
      %13 = arith.truncf %arg16 : vector<8x128xf32> to vector<8x128xbf16>
      %c0_16 = arith.constant 0 : index
      %c0_17 = arith.constant 0 : index
      %14 = vector.load %arg5[%c0_16, %c0_17] : memref<128x384xbf16, #tpu.memory_space<vmem>>, vector<128x384xbf16>
      %cst = arith.constant dense<0.000000e+00> : vector<8x384xf32>
      %15 = tpu.matmul %13, %14, %cst {dimension_numbers = #tpu.dot_dimension_numbers<[1], [0], [0], [1], [0, 0, 1, 1], [], []>} : vector<8x128xbf16>, vector<128x384xbf16>, vector<8x384xf32> -> vector<8x384xf32>
      %16 = vector.broadcast %3 : vector<1x384xf32> to vector<8x384xf32>
      %17 = arith.addf %15, %16 : vector<8x384xf32>
      %18 = arith.truncf %arg17 : vector<8x128xf32> to vector<8x128xbf16>
      %c0_18 = arith.constant 0 : index
      %c0_19 = arith.constant 0 : index
      %19 = vector.load %arg6[%c0_18, %c0_19] : memref<128x384xbf16, #tpu.memory_space<vmem>>, vector<128x384xbf16>
      %cst_20 = arith.constant dense<0.000000e+00> : vector<8x384xf32>
      %20 = tpu.matmul %18, %19, %cst_20 {dimension_numbers = #tpu.dot_dimension_numbers<[1], [0], [0], [1], [0, 0, 1, 1], [], []>} : vector<8x128xbf16>, vector<128x384xbf16>, vector<8x384xf32> -> vector<8x384xf32>
      %21 = vector.extract_strided_slice %17 {offsets = [0, 0], sizes = [8, 256], strides = [1, 1]} : vector<8x384xf32> to vector<8x256xf32>
      %22 = vector.extract_strided_slice %20 {offsets = [0, 0], sizes = [8, 256], strides = [1, 1]} : vector<8x384xf32> to vector<8x256xf32>
      %23 = arith.addf %21, %22 : vector<8x256xf32>
      %24 = arith.negf %23 : vector<8x256xf32>
      %25 = math.exp %24 : vector<8x256xf32>
      %cst_21 = arith.constant 1.000000e+00 : f32
      %26 = vector.broadcast %cst_21 : f32 to vector<8x256xf32>
      %27 = arith.addf %26, %25 : vector<8x256xf32>
      %28 = arith.divf %26, %27 : vector<8x256xf32>
      %29 = vector.extract_strided_slice %28 {offsets = [0, 0], sizes = [8, 128], strides = [1, 1]} : vector<8x256xf32> to vector<8x128xf32>
      %30 = vector.extract_strided_slice %28 {offsets = [0, 128], sizes = [8, 128], strides = [1, 1]} : vector<8x256xf32> to vector<8x128xf32>
      %31 = vector.extract_strided_slice %17 {offsets = [0, 256], sizes = [8, 128], strides = [1, 1]} : vector<8x384xf32> to vector<8x128xf32>
      %32 = vector.extract_strided_slice %20 {offsets = [0, 256], sizes = [8, 128], strides = [1, 1]} : vector<8x384xf32> to vector<8x128xf32>
      %33 = vector.broadcast %4 : vector<1x128xf32> to vector<8x128xf32>
      %34 = arith.addf %32, %33 : vector<8x128xf32>
      %35 = arith.mulf %29, %34 : vector<8x128xf32>
      %36 = arith.addf %31, %35 : vector<8x128xf32>
      %37 = math.tanh %36 : vector<8x128xf32>
      %cst_22 = arith.constant 1.000000e+00 : f32
      %38 = vector.broadcast %cst_22 : f32 to vector<8x128xf32>
      %39 = arith.subf %38, %30 : vector<8x128xf32>
      %40 = arith.mulf %39, %37 : vector<8x128xf32>
      %41 = arith.mulf %30, %arg17 : vector<8x128xf32>
      %42 = arith.addf %40, %41 : vector<8x128xf32>
      %43 = arith.truncf %42 : vector<8x128xf32> to vector<8x128xbf16>
      %c0_23 = arith.constant 0 : index
      %c0_24 = arith.constant 0 : index
      %44 = vector.load %arg9[%c0_23, %c0_24] : memref<128x128xbf16, #tpu.memory_space<vmem>>, vector<128x128xbf16>
      %cst_25 = arith.constant dense<0.000000e+00> : vector<8x128xf32>
      %45 = tpu.matmul %43, %44, %cst_25 {dimension_numbers = #tpu.dot_dimension_numbers<[1], [0], [0], [1], [0, 0, 1, 1], [], []>} : vector<8x128xbf16>, vector<128x128xbf16>, vector<8x128xf32> -> vector<8x128xf32>
      %46 = vector.broadcast %5 : vector<1x128xf32> to vector<8x128xf32>
      %47 = arith.addf %45, %46 : vector<8x128xf32>
      %cst_26 = arith.constant dense<0xFF800000> : vector<8xf32>
      %48 = vector.multi_reduction <maximumf>, %47, %cst_26 [1] : vector<8x128xf32> to vector<8xf32>
      %49 = vector.shape_cast %48 : vector<8xf32> to vector<8x1xf32>
      %50 = vector.broadcast %49 : vector<8x1xf32> to vector<8x128xf32>
      %51 = arith.cmpf oeq, %47, %50 : vector<8x128xf32>
      %c128_i32 = arith.constant 128 : i32
      %52 = vector.broadcast %c128_i32 : i32 to vector<8x128xi32>
      %53 = arith.select %51, %6, %52 : vector<8x128xi1>, vector<8x128xi32>
      %cst_27 = arith.constant dense<2147483647> : vector<8xi32>
      %54 = vector.multi_reduction <minsi>, %53, %cst_27 [1] : vector<8x128xi32> to vector<8xi32>
      %55 = vector.shape_cast %54 : vector<8xi32> to vector<8x1xi32>
      %c127_i32 = arith.constant 127 : i32
      %56 = vector.broadcast %c127_i32 : i32 to vector<8x1xi32>
      %57 = arith.minsi %55, %56 : vector<8x1xi32>
      %58 = vector.broadcast %57 : vector<8x1xi32> to vector<8x128xi32>
      %59 = arith.cmpi eq, %6, %58 : vector<8x128xi32>
      %60 = arith.extui %59 : vector<8x128xi1> to vector<8x128xi32>
      %61 = arith.sitofp %60 : vector<8x128xi32> to vector<8x128xf32>
      %c0_28 = arith.constant 0 : index
      %c0_29 = arith.constant 0 : index
      %62 = vector.load %arg4[%c0_28, %c0_29] : memref<128x128xf32, #tpu.memory_space<vmem>>, vector<128x128xf32>
      %cst_30 = arith.constant dense<0.000000e+00> : vector<8x128xf32>
      %63 = tpu.matmul %61, %62, %cst_30 {dimension_numbers = #tpu.dot_dimension_numbers<[1], [0], [0], [1], [0, 0, 1, 1], [], []>} : vector<8x128xf32>, vector<128x128xf32>, vector<8x128xf32> -> vector<8x128xf32>
      %cst_31 = arith.constant 0.000000e+00 : f32
      %64 = vector.broadcast %cst_31 : f32 to vector<8x128xf32>
      %65 = arith.maximumf %63, %64 : vector<8x128xf32>
      %66 = vector.broadcast %49 : vector<8x1xf32> to vector<8x128xf32>
      %67 = arith.subf %47, %66 : vector<8x128xf32>
      %68 = math.exp %67 : vector<8x128xf32>
      %cst_32 = arith.constant dense<0.000000e+00> : vector<8xf32>
      %69 = vector.multi_reduction <add>, %68, %cst_32 [1] : vector<8x128xf32> to vector<8xf32>
      %70 = vector.shape_cast %69 : vector<8xf32> to vector<8x1xf32>
      %71 = math.log %70 : vector<8x1xf32>
      %72 = vector.broadcast %71 : vector<8x1xf32> to vector<8x128xf32>
      %73 = arith.subf %67, %72 : vector<8x128xf32>
      %74 = vector.shape_cast %73 : vector<8x128xf32> to vector<1x8x128xf32>
      %75 = arith.index_cast %arg15 : i32 to index
      %c0_33 = arith.constant 0 : index
      %c0_34 = arith.constant 0 : index
      %76 = vector.load %arg11[%75, %c0_33, %c0_34] : memref<8x8x128xf32, #tpu.memory_space<vmem>>, vector<1x8x128xf32>
      tpu.vector_store %arg11[%75, %c0_33, %c0_34], %74 {strides = array<i32>} : memref<8x8x128xf32, #tpu.memory_space<vmem>>, vector<1x8x128xf32>,
      scf.yield %65, %42 : vector<8x128xf32>, vector<8x128xf32>
    }
    %c8_i32_11 = arith.constant 8 : i32
    %c0_12 = arith.constant 0 : index
    %c0_13 = arith.constant 0 : index
    %11 = vector.load %arg12[%c0_12, %c0_13] : memref<8x128xf32, #tpu.memory_space<vmem>>, vector<8x128xf32>
    tpu.vector_store %arg12[%c0_12, %c0_13], %10#0 {strides = array<i32>} : memref<8x128xf32, #tpu.memory_space<vmem>>, vector<8x128xf32>,
    %c0_14 = arith.constant 0 : index
    %c0_15 = arith.constant 0 : index
    %12 = vector.load %arg13[%c0_14, %c0_15] : memref<8x128xf32, #tpu.memory_space<vmem>>, vector<8x128xf32>
    tpu.vector_store %arg13[%c0_14, %c0_15], %10#1 {strides = array<i32>} : memref<8x128xf32, #tpu.memory_space<vmem>>, vector<8x128xf32>,
    return
  }
  func.func @transform_0(%arg0: i32, %arg1: i32) -> (i32, i32) {
    %c0_i32 = arith.constant 0 : i32
    %c0_i32_0 = arith.constant 0 : i32
    return %arg0, %c0_i32 : i32, i32
  }
  func.func @transform_1(%arg0: i32, %arg1: i32) -> (i32, i32) {
    %c0_i32 = arith.constant 0 : i32
    %c0_i32_0 = arith.constant 0 : i32
    return %arg0, %c0_i32 : i32, i32
  }
  func.func @transform_2(%arg0: i32, %arg1: i32) -> (i32, i32) {
    %c0_i32 = arith.constant 0 : i32
    %c0_i32_0 = arith.constant 0 : i32
    %c0_i32_1 = arith.constant 0 : i32
    return %c0_i32, %c0_i32_0 : i32, i32
  }
  func.func @transform_3(%arg0: i32, %arg1: i32) -> (i32, i32) {
    %c0_i32 = arith.constant 0 : i32
    %c0_i32_0 = arith.constant 0 : i32
    %c0_i32_1 = arith.constant 0 : i32
    return %c0_i32, %c0_i32_0 : i32, i32
  }
  func.func @transform_4(%arg0: i32, %arg1: i32) -> (i32, i32) {
    %c0_i32 = arith.constant 0 : i32
    %c0_i32_0 = arith.constant 0 : i32
    %c0_i32_1 = arith.constant 0 : i32
    return %c0_i32, %c0_i32_0 : i32, i32
  }
  func.func @transform_5(%arg0: i32, %arg1: i32) -> (i32, i32) {
    %c0_i32 = arith.constant 0 : i32
    %c0_i32_0 = arith.constant 0 : i32
    %c0_i32_1 = arith.constant 0 : i32
    return %c0_i32, %c0_i32_0 : i32, i32
  }
  func.func @transform_6(%arg0: i32, %arg1: i32) -> (i32, i32) {
    %c0_i32 = arith.constant 0 : i32
    %c0_i32_0 = arith.constant 0 : i32
    %c0_i32_1 = arith.constant 0 : i32
    return %c0_i32, %c0_i32_0 : i32, i32
  }
  func.func @transform_7(%arg0: i32, %arg1: i32) -> (i32, i32) {
    %c0_i32 = arith.constant 0 : i32
    %c0_i32_0 = arith.constant 0 : i32
    %c0_i32_1 = arith.constant 0 : i32
    return %c0_i32, %c0_i32_0 : i32, i32
  }
  func.func @transform_8(%arg0: i32, %arg1: i32) -> (i32, i32) {
    %c0_i32 = arith.constant 0 : i32
    %c0_i32_0 = arith.constant 0 : i32
    %c0_i32_1 = arith.constant 0 : i32
    return %c0_i32, %c0_i32_0 : i32, i32
  }
  func.func @transform_9(%arg0: i32, %arg1: i32) -> (i32, i32, i32) {
    %c0_i32 = arith.constant 0 : i32
    %c0_i32_0 = arith.constant 0 : i32
    return %arg1, %arg0, %c0_i32 : i32, i32, i32
  }
}

</mosaic_0001>

<llo_original>
// kernel: tpu_custom_call.1
$region0: #{tpu_custom_call.1}
  #allocation0 [shape = 'u32[]', space=smem, size = 0x4, offset = 0x4, fixed_abs, tag = 'smem constant byte address 0x4 - core index']
  #allocation1 [shape = 'u32[72,128]{1,0:T(1,128)}', space=vmem, size = 0x9000, scoped, tag = 'internal scratch']
  #allocation2 [shape = 'f32[8,128]{1,0:T(8,128)}', space=vmem, size = 0x1000, scoped, tag = 'scratch operand']
  #allocation3 [shape = 'f32[8,128]{1,0:T(8,128)}', space=vmem, size = 0x1000, scoped, tag = 'scratch operand']
  #allocation4 [shape = 's32[8,1]{1,0:T(8,128)}', space=vmem, size = 0x1000, scoped, tag = 'scratch operand']
  %s0 = inlined_call_operand.hbm [shape: f32[8,128], index: 0, kind: input, shape index: {}]
  %s1 = inlined_call_operand.hbm [shape: f32[8,128], index: 1, kind: input, shape index: {}]
  %s2 = inlined_call_operand.hbm [shape: f32[128,128], index: 2, kind: input, shape index: {}]
  %s3 = inlined_call_operand.hbm [shape: bf16[128,384], index: 3, kind: input, shape index: {}]
  %s4 = inlined_call_operand.hbm [shape: bf16[128,384], index: 4, kind: input, shape index: {}]
  %s5 = inlined_call_operand.vmem [shape: f32[1,384], index: 5, kind: input, shape index: {}]
  %s6 = inlined_call_operand.vmem [shape: f32[1,128], index: 6, kind: input, shape index: {}]
  %s7 = inlined_call_operand.hbm [shape: bf16[128,128], index: 7, kind: input, shape index: {}]
  %s8 = inlined_call_operand.vmem [shape: f32[1,128], index: 8, kind: input, shape index: {}]
  %s9 = inlined_call_operand.hbm [shape: f32[8,8,128], index: 9, kind: output, shape index: {}]
  %s10 = sld [smem:[#allocation0]]
  $region81: #{tpu_custom_call.1} parent=0
    _
  %s12 = ssub.s32 1, %s10
  %s13 = scalar_select 0, %s12, %s10
  $region1: #{tpu_custom_call.1} parent=0
    #allocation5 [shape = 'u8[4096]{0}', space=vmem, size = 0x1000, scoped, tag = 'input window, operand 0, single buffered']
    #allocation6 [shape = 's32[1]{0}', space=sflag, size = 0x4, scoped, tag = 'scoped memory for tpu_custom_call.1']
    #allocation7 [shape = 's32[1]{0}', space=sflag, size = 0x4, scoped, tag = 'scoped memory for tpu_custom_call.1']
    #allocation8 [shape = 'u8[4096]{0}', space=vmem, size = 0x1000, scoped, tag = 'input window, operand 1, single buffered']
    #allocation9 [shape = 's32[1]{0}', space=sflag, size = 0x4, scoped, tag = 'scoped memory for tpu_custom_call.1']
    #allocation10 [shape = 'u8[65536]{0}', space=vmem, size = 0x10000, scoped, tag = 'input window, operand 2, single buffered']
    #allocation11 [shape = 'u8[98304]{0}', space=vmem, size = 0x18000, scoped, tag = 'input window, operand 3, single buffered']
    #allocation12 [shape = 's32[1]{0}', space=sflag, size = 0x4, scoped, tag = 'scoped memory for tpu_custom_call.1']
    #allocation13 [shape = 'u8[98304]{0}', space=vmem, size = 0x18000, scoped, tag = 'input window, operand 4, single buffered']
    #allocation14 [shape = 'u8[32768]{0}', space=vmem, size = 0x8000, scoped, tag = 'input window, operand 7, single buffered']
    #allocation15 [shape = 's32[1]{0}', space=sflag, size = 0x4, scoped, tag = 'scoped memory for tpu_custom_call.1']
    #allocation16 [shape = 'u8[32768]{0}', space=vmem, size = 0x8000, scoped, tag = 'output window, operand 0, single buffered']
    %14 = vsyncpa [#allocation6], 0
    %15 = vsyncpa [#allocation9], 0
    %16 = vsyncpa [#allocation12], 0
    %17 = vsyncpa [#allocation15], 0
    %18 = vsyncpa [#allocation7], 0
    // Predicated region
    $region2: #{tpu_custom_call.1} parent=1 // pred_check
      _
    $region3: #{tpu_custom_call.1} parent=1 // pred_check_branch
      %20 = sbr.rel (0) target = $region5
    $region4: #{tpu_custom_call.1} parent=1 // pred_region
      %22 = vsyncadd [#allocation6], 0
      %s24 = sshll.u32 %s0, 4
      %s25 = int_to_ptr.hbm [resolvable:$true] %s24
      %s26 = sshll.u32 [#allocation5], 4
      %s27 = int_to_ptr.vmem [resolvable:$true] %s26
      %29 = dma.hbm_to_vmem [thread:$0]  %s25, 128, %s27, [#allocation6]
    $region5: #{tpu_custom_call.1} parent=1 // pred_fallthru
      _
    // Predicated region
    $region6: #{tpu_custom_call.1} parent=1 // pred_check
      _
    $region7: #{tpu_custom_call.1} parent=1 // pred_check_branch
      %31 = sbr.rel (0) target = $region9
    $region8: #{tpu_custom_call.1} parent=1 // pred_region
      %33 = vsyncadd [#allocation9], 0
      %s35 = sshll.u32 %s1, 4
      %s36 = int_to_ptr.hbm [resolvable:$true] %s35
      %s37 = sshll.u32 [#allocation8], 4
      %s38 = int_to_ptr.vmem [resolvable:$true] %s37
      %40 = dma.hbm_to_vmem [thread:$0]  %s36, 128, %s38, [#allocation9]
    $region9: #{tpu_custom_call.1} parent=1 // pred_fallthru
      _
    // Predicated region
    $region10: #{tpu_custom_call.1} parent=1 // pred_check
      _
    $region11: #{tpu_custom_call.1} parent=1 // pred_check_branch
      %42 = sbr.rel (0) target = $region13
    $region12: #{tpu_custom_call.1} parent=1 // pred_region
      %44 = vsyncadd [#allocation9], 0
      %s45 = sshll.u32 %s2, 4
      %s46 = int_to_ptr.hbm [resolvable:$true] %s45
      %s47 = sshll.u32 [#allocation10], 4
      %s48 = int_to_ptr.vmem [resolvable:$true] %s47
      %53 = dma.hbm_to_vmem [thread:$0]  %s46, 2048, %s48, [#allocation9], 128, 128, 8
    $region13: #{tpu_custom_call.1} parent=1 // pred_fallthru
      _
    // Predicated region
    $region14: #{tpu_custom_call.1} parent=1 // pred_check
      _
    $region15: #{tpu_custom_call.1} parent=1 // pred_check_branch
      %55 = sbr.rel (0) target = $region17
    $region16: #{tpu_custom_call.1} parent=1 // pred_region
      %57 = vsyncadd [#allocation12], 0
      %s58 = sshll.u32 %s3, 4
      %s59 = int_to_ptr.hbm [resolvable:$true] %s58
      %s60 = sshll.u32 [#allocation11], 4
      %s61 = int_to_ptr.vmem [resolvable:$true] %s60
      %66 = dma.hbm_to_vmem [thread:$0]  %s59, 3072, %s61, [#allocation12], 192, 192, 12
    $region17: #{tpu_custom_call.1} parent=1 // pred_fallthru
      _
    // Predicated region
    $region18: #{tpu_custom_call.1} parent=1 // pred_check
      _
    $region19: #{tpu_custom_call.1} parent=1 // pred_check_branch
      %68 = sbr.rel (0) target = $region21
    $region20: #{tpu_custom_call.1} parent=1 // pred_region
      %70 = vsyncadd [#allocation12], 0
      %s71 = sshll.u32 %s4, 4
      %s72 = int_to_ptr.hbm [resolvable:$true] %s71
      %s73 = sshll.u32 [#allocation13], 4
      %s74 = int_to_ptr.vmem [resolvable:$true] %s73
      %79 = dma.hbm_to_vmem [thread:$0]  %s72, 3072, %s74, [#allocation12], 192, 192, 12
    $region21: #{tpu_custom_call.1} parent=1 // pred_fallthru
      _
    // Predicated region
    $region22: #{tpu_custom_call.1} parent=1 // pred_check
      _
    $region23: #{tpu_custom_call.1} parent=1 // pred_check_branch
      %81 = sbr.rel (0) target = $region25
    $region24: #{tpu_custom_call.1} parent=1 // pred_region
      _
    $region25: #{tpu_custom_call.1} parent=1 // pred_fallthru
      _
    // Predicated region
    $region26: #{tpu_custom_call.1} parent=1 // pred_check
      _
    $region27: #{tpu_custom_call.1} parent=1 // pred_check_branch
      %83 = sbr.rel (0) target = $region29
    $region28: #{tpu_custom_call.1} parent=1 // pred_region
      _
    $region29: #{tpu_custom_call.1} parent=1 // pred_fallthru
      _
    // Predicated region
    $region30: #{tpu_custom_call.1} parent=1 // pred_check
      _
    $region31: #{tpu_custom_call.1} parent=1 // pred_check_branch
      %85 = sbr.rel (0) target = $region33
    $region32: #{tpu_custom_call.1} parent=1 // pred_region
      %87 = vsyncadd [#allocation15], 0
      %s88 = sshll.u32 %s7, 4
      %s89 = int_to_ptr.hbm [resolvable:$true] %s88
      %s90 = sshll.u32 [#allocation14], 4
      %s91 = int_to_ptr.vmem [resolvable:$true] %s90
      %96 = dma.hbm_to_vmem [thread:$0]  %s89, 1024, %s91, [#allocation15], 64, 64, 4
    $region33: #{tpu_custom_call.1} parent=1 // pred_fallthru
      _
    // Predicated region
    $region34: #{tpu_custom_call.1} parent=1 // pred_check
      _
    $region35: #{tpu_custom_call.1} parent=1 // pred_check_branch
      %98 = sbr.rel (0) target = $region37
    $region36: #{tpu_custom_call.1} parent=1 // pred_region
      _
    $region37: #{tpu_custom_call.1} parent=1 // pred_fallthru
      _
    // Predicated region
    $region38: #{tpu_custom_call.1} parent=1 // pred_check
      _
    $region39: #{tpu_custom_call.1} parent=1 // pred_check_branch
      %100 = sbr.rel (0) target = $region41
    $region40: #{tpu_custom_call.1} parent=1 // pred_region
      %102 = dma.done [#allocation6], 128
    $region41: #{tpu_custom_call.1} parent=1 // pred_fallthru
      _
    // Predicated region
    $region42: #{tpu_custom_call.1} parent=1 // pred_check
      _
    $region43: #{tpu_custom_call.1} parent=1 // pred_check_branch
      %104 = sbr.rel (0) target = $region45
    $region44: #{tpu_custom_call.1} parent=1 // pred_region
      %106 = dma.done [#allocation9], 128
    $region45: #{tpu_custom_call.1} parent=1 // pred_fallthru
      _
    // Predicated region
    $region46: #{tpu_custom_call.1} parent=1 // pred_check
      _
    $region47: #{tpu_custom_call.1} parent=1 // pred_check_branch
      %108 = sbr.rel (0) target = $region49
    $region48: #{tpu_custom_call.1} parent=1 // pred_region
      %110 = dma.done [#allocation9], 2048
    $region49: #{tpu_custom_call.1} parent=1 // pred_fallthru
      _
    // Predicated region
    $region50: #{tpu_custom_call.1} parent=1 // pred_check
      _
    $region51: #{tpu_custom_call.1} parent=1 // pred_check_branch
      %112 = sbr.rel (0) target = $region53
    $region52: #{tpu_custom_call.1} parent=1 // pred_region
      %114 = dma.done [#allocation12], 3072
    $region53: #{tpu_custom_call.1} parent=1 // pred_fallthru
      _
    // Predicated region
    $region54: #{tpu_custom_call.1} parent=1 // pred_check
      _
    $region55: #{tpu_custom_call.1} parent=1 // pred_check_branch
      %116 = sbr.rel (0) target = $region57
    $region56: #{tpu_custom_call.1} parent=1 // pred_region
      %118 = dma.done [#allocation12], 3072
    $region57: #{tpu_custom_call.1} parent=1 // pred_fallthru
      _
    // Predicated region
    $region58: #{tpu_custom_call.1} parent=1 // pred_check
      _
    $region59: #{tpu_custom_call.1} parent=1 // pred_check_branch
      %120 = sbr.rel (0) target = $region61
    $region60: #{tpu_custom_call.1} parent=1 // pred_region
      %122 = dma.done [#allocation15], 1024
    $region61: #{tpu_custom_call.1} parent=1 // pred_fallthru
      _
    %p123 = scmp.eq.s32.totalorder 0, 0
    // Predicated region
    $region62: #{tpu_custom_call.1} parent=1 // pred_check
      %p124 = pneg %p123
    $region63: #{tpu_custom_call.1} parent=1 // pred_check_branch
      %126 = sbr.rel (%p124) target = $region65
    $region64: #{tpu_custom_call.1} parent=1 // pred_region
      %v127 = vld [vmem:[#allocation5] sm:$0xff]
      %128 = vst [vmem:[#allocation2] sm:$0xff] %v127
      %v129 = vld [vmem:[#allocation8] sm:$0xff]
      %130 = vst [vmem:[#allocation3] sm:$0xff] %v129
    $region65: #{tpu_custom_call.1} parent=1 // pred_fallthru
      _
    %v131 = vld [vmem:[%s5] sm:$0x7]
    %v132 = vld [vmem:[%s6] sm:$0x1]
    %v133 = vld [vmem:[%s8] sm:$0x1]
    %v134 = vlaneseq
    %v135 = vand.u32 %v134, 127
    %v136 = vld [vmem:[#allocation2] sm:$0xff]
    %v137 = vld [vmem:[#allocation3] sm:$0xff]
    loop: start=0, step=1, limit=8
    $region66: #{tpu_custom_call.1} parent=1 // loop_pre_header
      _
    $region67: #{tpu_custom_call.1} parent=1 // loop_header
      %s139 = sphi 0, %s143
      %p140 = scmp.ge.s32.totalorder %s139, 8
      %v144 = vphi %v136, %v744
      %v145 = vphi %v137, %v603
    $region68: #{tpu_custom_call.1} parent=1 // loop_header_branch
      %142 = sbr.rel (%p140) target = $region72
    $region69: #{tpu_custom_call.1} parent=1 // loop_body
      %v146 = vpack.c.bf16 %v144, %v144
      %v147 = vld [vmem:[#allocation11] sm:$0xff]
      %v148 = vld [vmem:[#allocation11 + $0x8] sm:$0xf]
      %v149 = vld [vmem:[#allocation11 + $0xc] sm:$0xff]
      %v150 = vld [vmem:[#allocation11 + $0x14] sm:$0xf]
      %v151 = vld [vmem:[#allocation11 + $0x18] sm:$0xff]
      %v152 = vld [vmem:[#allocation11 + $0x20] sm:$0xf]
      %v153 = vld [vmem:[#allocation11 + $0x24] sm:$0xff]
      %v154 = vld [vmem:[#allocation11 + $0x2c] sm:$0xf]
      %v155 = vld [vmem:[#allocation11 + $0x30] sm:$0xff]
      %v156 = vld [vmem:[#allocation11 + $0x38] sm:$0xf]
      %v157 = vld [vmem:[#allocation11 + $0x3c] sm:$0xff]
      %v158 = vld [vmem:[#allocation11 + $0x44] sm:$0xf]
      %v159 = vld [vmem:[#allocation11 + $0x48] sm:$0xff]
      %v160 = vld [vmem:[#allocation11 + $0x50] sm:$0xf]
      %v161 = vld [vmem:[#allocation11 + $0x54] sm:$0xff]
      %v162 = vld [vmem:[#allocation11 + $0x5c] sm:$0xf]
      %v163 = vld [vmem:[#allocation11 + $0x60] sm:$0xff]
      %v164 = vld [vmem:[#allocation11 + $0x68] sm:$0xf]
      %v165 = vld [vmem:[#allocation11 + $0x6c] sm:$0xff]
      %v166 = vld [vmem:[#allocation11 + $0x74] sm:$0xf]
      %v167 = vld [vmem:[#allocation11 + $0x78] sm:$0xff]
      %v168 = vld [vmem:[#allocation11 + $0x80] sm:$0xf]
      %v169 = vld [vmem:[#allocation11 + $0x84] sm:$0xff]
      %v170 = vld [vmem:[#allocation11 + $0x8c] sm:$0xf]
      %v171 = vld [vmem:[#allocation11 + $0x90] sm:$0xff]
      %v172 = vld [vmem:[#allocation11 + $0x98] sm:$0xf]
      %v173 = vld [vmem:[#allocation11 + $0x9c] sm:$0xff]
      %v174 = vld [vmem:[#allocation11 + $0xa4] sm:$0xf]
      %v175 = vld [vmem:[#allocation11 + $0xa8] sm:$0xff]
      %v176 = vld [vmem:[#allocation11 + $0xb0] sm:$0xf]
      %v177 = vld [vmem:[#allocation11 + $0xb4] sm:$0xff]
      %v178 = vld [vmem:[#allocation11 + $0xbc] sm:$0xf]
      %v180 = vperm.slane %v131, 0
      %v181 = vperm.slane %v131, 1
      %v182 = vperm.slane %v131, 2
      %v218 = vunpack.c.l.b16 %v147
      %v219 = vunpack.c.h.b16 %v147
      %v220 = vunpack.c.l.b16 %v148
      %v221 = vunpack.c.l.b16 %v149
      %v222 = vunpack.c.h.b16 %v149
      %v223 = vunpack.c.l.b16 %v150
      %v224 = vunpack.c.l.b16 %v151
      %v225 = vunpack.c.h.b16 %v151
      %v226 = vunpack.c.l.b16 %v152
      %v227 = vunpack.c.l.b16 %v153
      %v228 = vunpack.c.h.b16 %v153
      %v229 = vunpack.c.l.b16 %v154
      %v230 = vunpack.c.l.b16 %v155
      %v231 = vunpack.c.h.b16 %v155
      %v232 = vunpack.c.l.b16 %v156
      %v233 = vunpack.c.l.b16 %v157
      %v234 = vunpack.c.h.b16 %v157
      %v235 = vunpack.c.l.b16 %v158
      %v236 = vunpack.c.l.b16 %v159
      %v237 = vunpack.c.h.b16 %v159
      %v238 = vunpack.c.l.b16 %v160
      %v239 = vunpack.c.l.b16 %v161
      %v240 = vunpack.c.h.b16 %v161
      %v241 = vunpack.c.l.b16 %v162
      %v242 = vunpack.c.l.b16 %v163
      %v243 = vunpack.c.h.b16 %v163
      %v244 = vunpack.c.l.b16 %v164
      %v245 = vunpack.c.l.b16 %v165
      %v246 = vunpack.c.h.b16 %v165
      %v247 = vunpack.c.l.b16 %v166
      %v248 = vunpack.c.l.b16 %v167
      %v249 = vunpack.c.h.b16 %v167
      %v250 = vunpack.c.l.b16 %v168
      %v251 = vunpack.c.l.b16 %v169
      %v252 = vunpack.c.h.b16 %v169
      %v253 = vunpack.c.l.b16 %v170
      %v254 = vunpack.c.l.b16 %v171
      %v255 = vunpack.c.h.b16 %v171
      %v256 = vunpack.c.l.b16 %v172
      %v257 = vunpack.c.l.b16 %v173
      %v258 = vunpack.c.h.b16 %v173
      %v259 = vunpack.c.l.b16 %v174
      %v260 = vunpack.c.l.b16 %v175
      %v261 = vunpack.c.h.b16 %v175
      %v262 = vunpack.c.l.b16 %v176
      %v263 = vunpack.c.l.b16 %v177
      %v264 = vunpack.c.h.b16 %v177
      %v265 = vunpack.c.l.b16 %v178
      %v266 = vpack.c.b16 %v221, %v218
      %v267 = vpack.c.b16 %v222, %v219
      %v268 = vpack.c.b16 %v223, %v220
      %v269 = vpack.c.b16 %v227, %v224
      %v270 = vpack.c.b16 %v228, %v225
      %v271 = vpack.c.b16 %v229, %v226
      %v272 = vpack.c.b16 %v233, %v230
      %v273 = vpack.c.b16 %v234, %v231
      %v274 = vpack.c.b16 %v235, %v232
      %v275 = vpack.c.b16 %v239, %v236
      %v276 = vpack.c.b16 %v240, %v237
      %v277 = vpack.c.b16 %v241, %v238
      %v278 = vpack.c.b16 %v245, %v242
      %v279 = vpack.c.b16 %v246, %v243
      %v280 = vpack.c.b16 %v247, %v244
      %v281 = vpack.c.b16 %v251, %v248
      %v282 = vpack.c.b16 %v252, %v249
      %v283 = vpack.c.b16 %v253, %v250
      %v284 = vpack.c.b16 %v257, %v254
      %v285 = vpack.c.b16 %v258, %v255
      %v286 = vpack.c.b16 %v259, %v256
      %v287 = vpack.c.b16 %v263, %v260
      %v288 = vpack.c.b16 %v264, %v261
      %v289 = vpack.c.b16 %v265, %v262
      %314 = vmatpush.bf16.msra.mxu0 %v287
      %315 = vmatpush.bf16.msra.mxu0 %v284
      %316 = vmatpush.bf16.msra.mxu0 %v281
      %317 = vmatpush.bf16.msra.mxu0 %v278
      %318 = vmatpush.bf16.msra.mxu0 %v275
      %319 = vmatpush.bf16.msra.mxu0 %v272
      %320 = vmatpush.bf16.msra.mxu0 %v269
      %321 = vmatpush.bf16.msra.mxu0 %v266
      %322 = vmatmul.bf16.gmra.mxu0 %v146
      %v323 = vpop.f32.mrf.mxu0
      %v324 = vadd.f32 %v180, %v323
      %v325 = vpop.f32.mrf.mxu0
      %326 = vdwg.mxu0
      %327 = vmatpush.bf16.msra.mxu0 %v288
      %328 = vmatpush.bf16.msra.mxu0 %v285
      %329 = vmatpush.bf16.msra.mxu0 %v282
      %330 = vmatpush.bf16.msra.mxu0 %v279
      %331 = vmatpush.bf16.msra.mxu0 %v276
      %332 = vmatpush.bf16.msra.mxu0 %v273
      %333 = vmatpush.bf16.msra.mxu0 %v270
      %334 = vmatpush.bf16.msra.mxu0 %v267
      %335 = vmatmul.bf16.gmra.mxu0 %v146
      %v336 = vpop.f32.mrf.mxu0
      %v337 = vadd.f32 %v181, %v336
      %v338 = vpop.f32.mrf.mxu0
      %339 = vdwg.mxu0
      %340 = vmatpush.bf16.msra.mxu0 %v289
      %341 = vmatpush.bf16.msra.mxu0 %v286
      %342 = vmatpush.bf16.msra.mxu0 %v283
      %343 = vmatpush.bf16.msra.mxu0 %v280
      %344 = vmatpush.bf16.msra.mxu0 %v277
      %345 = vmatpush.bf16.msra.mxu0 %v274
      %346 = vmatpush.bf16.msra.mxu0 %v271
      %347 = vmatpush.bf16.msra.mxu0 %v268
      %348 = vmatmul.bf16.gmra.mxu0 %v146
      %v349 = vpop.f32.mrf.mxu0
      %v350 = vadd.f32 %v182, %v349
      %v351 = vpop.f32.mrf.mxu0
      %352 = vdwg.mxu0
      %v353 = vpack.c.bf16 %v145, %v145
      %v354 = vld [vmem:[#allocation13] sm:$0xff]
      %v355 = vld [vmem:[#allocation13 + $0x8] sm:$0xf]
      %v356 = vld [vmem:[#allocation13 + $0xc] sm:$0xff]
      %v357 = vld [vmem:[#allocation13 + $0x14] sm:$0xf]
      %v358 = vld [vmem:[#allocation13 + $0x18] sm:$0xff]
      %v359 = vld [vmem:[#allocation13 + $0x20] sm:$0xf]
      %v360 = vld [vmem:[#allocation13 + $0x24] sm:$0xff]
      %v361 = vld [vmem:[#allocation13 + $0x2c] sm:$0xf]
      %v362 = vld [vmem:[#allocation13 + $0x30] sm:$0xff]
      %v363 = vld [vmem:[#allocation13 + $0x38] sm:$0xf]
      %v364 = vld [vmem:[#allocation13 + $0x3c] sm:$0xff]
      %v365 = vld [vmem:[#allocation13 + $0x44] sm:$0xf]
      %v366 = vld [vmem:[#allocation13 + $0x48] sm:$0xff]
      %v367 = vld [vmem:[#allocation13 + $0x50] sm:$0xf]
      %v368 = vld [vmem:[#allocation13 + $0x54] sm:$0xff]
      %v369 = vld [vmem:[#allocation13 + $0x5c] sm:$0xf]
      %v370 = vld [vmem:[#allocation13 + $0x60] sm:$0xff]
      %v371 = vld [vmem:[#allocation13 + $0x68] sm:$0xf]
      %v372 = vld [vmem:[#allocation13 + $0x6c] sm:$0xff]
      %v373 = vld [vmem:[#allocation13 + $0x74] sm:$0xf]
      %v374 = vld [vmem:[#allocation13 + $0x78] sm:$0xff]
      %v375 = vld [vmem:[#allocation13 + $0x80] sm:$0xf]
      %v376 = vld [vmem:[#allocation13 + $0x84] sm:$0xff]
      %v377 = vld [vmem:[#allocation13 + $0x8c] sm:$0xf]
      %v378 = vld [vmem:[#allocation13 + $0x90] sm:$0xff]
      %v379 = vld [vmem:[#allocation13 + $0x98] sm:$0xf]
      %v380 = vld [vmem:[#allocation13 + $0x9c] sm:$0xff]
      %v381 = vld [vmem:[#allocation13 + $0xa4] sm:$0xf]
      %v382 = vld [vmem:[#allocation13 + $0xa8] sm:$0xff]
      %v383 = vld [vmem:[#allocation13 + $0xb0] sm:$0xf]
      %v384 = vld [vmem:[#allocation13 + $0xb4] sm:$0xff]
      %v385 = vld [vmem:[#allocation13 + $0xbc] sm:$0xf]
      %v418 = vunpack.c.l.b16 %v354
      %v419 = vunpack.c.h.b16 %v354
      %v420 = vunpack.c.l.b16 %v355
      %v421 = vunpack.c.l.b16 %v356
      %v422 = vunpack.c.h.b16 %v356
      %v423 = vunpack.c.l.b16 %v357
      %v424 = vunpack.c.l.b16 %v358
      %v425 = vunpack.c.h.b16 %v358
      %v426 = vunpack.c.l.b16 %v359
      %v427 = vunpack.c.l.b16 %v360
      %v428 = vunpack.c.h.b16 %v360
      %v429 = vunpack.c.l.b16 %v361
      %v430 = vunpack.c.l.b16 %v362
      %v431 = vunpack.c.h.b16 %v362
      %v432 = vunpack.c.l.b16 %v363
      %v433 = vunpack.c.l.b16 %v364
      %v434 = vunpack.c.h.b16 %v364
      %v435 = vunpack.c.l.b16 %v365
      %v436 = vunpack.c.l.b16 %v366
      %v437 = vunpack.c.h.b16 %v366
      %v438 = vunpack.c.l.b16 %v367
      %v439 = vunpack.c.l.b16 %v368
      %v440 = vunpack.c.h.b16 %v368
      %v441 = vunpack.c.l.b16 %v369
      %v442 = vunpack.c.l.b16 %v370
      %v443 = vunpack.c.h.b16 %v370
      %v444 = vunpack.c.l.b16 %v371
      %v445 = vunpack.c.l.b16 %v372
      %v446 = vunpack.c.h.b16 %v372
      %v447 = vunpack.c.l.b16 %v373
      %v448 = vunpack.c.l.b16 %v374
      %v449 = vunpack.c.h.b16 %v374
      %v450 = vunpack.c.l.b16 %v375
      %v451 = vunpack.c.l.b16 %v376
      %v452 = vunpack.c.h.b16 %v376
      %v453 = vunpack.c.l.b16 %v377
      %v454 = vunpack.c.l.b16 %v378
      %v455 = vunpack.c.h.b16 %v378
      %v456 = vunpack.c.l.b16 %v379
      %v457 = vunpack.c.l.b16 %v380
      %v458 = vunpack.c.h.b16 %v380
      %v459 = vunpack.c.l.b16 %v381
      %v460 = vunpack.c.l.b16 %v382
      %v461 = vunpack.c.h.b16 %v382
      %v462 = vunpack.c.l.b16 %v383
      %v463 = vunpack.c.l.b16 %v384
      %v464 = vunpack.c.h.b16 %v384
      %v465 = vunpack.c.l.b16 %v385
      %v466 = vpack.c.b16 %v421, %v418
      %v467 = vpack.c.b16 %v422, %v419
      %v468 = vpack.c.b16 %v423, %v420
      %v469 = vpack.c.b16 %v427, %v424
      %v470 = vpack.c.b16 %v428, %v425
      %v471 = vpack.c.b16 %v429, %v426
      %v472 = vpack.c.b16 %v433, %v430
      %v473 = vpack.c.b16 %v434, %v431
      %v474 = vpack.c.b16 %v435, %v432
      %v475 = vpack.c.b16 %v439, %v436
      %v476 = vpack.c.b16 %v440, %v437
      %v477 = vpack.c.b16 %v441, %v438
      %v478 = vpack.c.b16 %v445, %v442
      %v479 = vpack.c.b16 %v446, %v443
      %v480 = vpack.c.b16 %v447, %v444
      %v481 = vpack.c.b16 %v451, %v448
      %v482 = vpack.c.b16 %v452, %v449
      %v483 = vpack.c.b16 %v453, %v450
      %v484 = vpack.c.b16 %v457, %v454
      %v485 = vpack.c.b16 %v458, %v455
      %v486 = vpack.c.b16 %v459, %v456
      %v487 = vpack.c.b16 %v463, %v460
      %v488 = vpack.c.b16 %v464, %v461
      %v489 = vpack.c.b16 %v465, %v462
      %514 = vmatpush.bf16.msra.mxu0 %v487
      %515 = vmatpush.bf16.msra.mxu0 %v484
      %516 = vmatpush.bf16.msra.mxu0 %v481
      %517 = vmatpush.bf16.msra.mxu0 %v478
      %518 = vmatpush.bf16.msra.mxu0 %v475
      %519 = vmatpush.bf16.msra.mxu0 %v472
      %520 = vmatpush.bf16.msra.mxu0 %v469
      %521 = vmatpush.bf16.msra.mxu0 %v466
      %522 = vmatmul.bf16.gmra.mxu0 %v353
      %v523 = vpop.f32.mrf.mxu0
      %v524 = vadd.f32 0.0, %v523
      %v525 = vpop.f32.mrf.mxu0
      %526 = vdwg.mxu0
      %527 = vmatpush.bf16.msra.mxu0 %v488
      %528 = vmatpush.bf16.msra.mxu0 %v485
      %529 = vmatpush.bf16.msra.mxu0 %v482
      %530 = vmatpush.bf16.msra.mxu0 %v479
      %531 = vmatpush.bf16.msra.mxu0 %v476
      %532 = vmatpush.bf16.msra.mxu0 %v473
      %533 = vmatpush.bf16.msra.mxu0 %v470
      %534 = vmatpush.bf16.msra.mxu0 %v467
      %535 = vmatmul.bf16.gmra.mxu0 %v353
      %v536 = vpop.f32.mrf.mxu0
      %v537 = vadd.f32 0.0, %v536
      %v538 = vpop.f32.mrf.mxu0
      %539 = vdwg.mxu0
      %540 = vmatpush.bf16.msra.mxu0 %v489
      %541 = vmatpush.bf16.msra.mxu0 %v486
      %542 = vmatpush.bf16.msra.mxu0 %v483
      %543 = vmatpush.bf16.msra.mxu0 %v480
      %544 = vmatpush.bf16.msra.mxu0 %v477
      %545 = vmatpush.bf16.msra.mxu0 %v474
      %546 = vmatpush.bf16.msra.mxu0 %v471
      %547 = vmatpush.bf16.msra.mxu0 %v468
      %548 = vmatmul.bf16.gmra.mxu0 %v353
      %v549 = vpop.f32.mrf.mxu0
      %v550 = vadd.f32 0.0, %v549
      %v551 = vpop.f32.mrf.mxu0
      %552 = vdwg.mxu0
      %v553 = vadd.f32 %v324, %v524
      %v554 = vadd.f32 %v337, %v537
      %v555 = vxor.u32 %v553, 2147483648
      %v556 = vxor.u32 %v554, 2147483648
      %v557 = vmul.f32 %v555, 1.442695
      %v558 = vpow.pop %v557
      %v559 = vmul.f32 %v556, 1.442695
      %v560 = vpow.pop %v559
      %v561 = vadd.f32 %v558, 1.0
      %v562 = vadd.f32 %v560, 1.0
      %v563 = vrcp.pop %v561
      %v564 = vmul.f32 %v561, %v563
      %v565 = vsub.f32 1.0, %v564
      %v566 = vmul.f32 %v563, %v565
      %v567 = vadd.f32 %v563, %v566
      %vm568 = vweird.f32 %v561
      %vm569 = vweird.f32 %v563
      %vm570 = vmor %vm568, %vm569
      %v571 = vsel %vm570, %v563, %v567
      %v572 = vand.u32 2147483647, %v561
      %vm573 = vcmp.eq.f32.partialorder %v572, 8.507059e+37
      %v574 = vand.u32 %v561, 2147483648
      %v575 = vor.u32 1.1754944e-38, %v574
      %v576 = vsel %vm573, %v575, %v571
      %v577 = vmul.f32 1.0, %v576
      %v578 = vrcp.pop %v562
      %v579 = vmul.f32 %v562, %v578
      %v580 = vsub.f32 1.0, %v579
      %v581 = vmul.f32 %v578, %v580
      %v582 = vadd.f32 %v578, %v581
      %vm583 = vweird.f32 %v562
      %vm584 = vweird.f32 %v578
      %vm585 = vmor %vm583, %vm584
      %v586 = vsel %vm585, %v578, %v582
      %v587 = vand.u32 2147483647, %v562
      %vm588 = vcmp.eq.f32.partialorder %v587, 8.507059e+37
      %v589 = vand.u32 %v562, 2147483648
      %v590 = vor.u32 1.1754944e-38, %v589
      %v591 = vsel %vm588, %v590, %v586
      %v592 = vmul.f32 1.0, %v591
      %v594 = vperm.slane %v132, 0
      %v596 = vadd.f32 %v550, %v594
      %v597 = vmul.f32 %v577, %v596
      %v598 = vadd.f32 %v350, %v597
      %v599 = vtanh.pop %v598
      %v600 = vsub.f32 1.0, %v592
      %v601 = vmul.f32 %v600, %v599
      %v602 = vmul.f32 %v592, %v145
      %v603 = vadd.f32 %v601, %v602
      %v604 = vpack.c.bf16 %v603, %v603
      %v605 = vld [vmem:[#allocation14] sm:$0xf]
      %v606 = vld [vmem:[#allocation14 + $0x4] sm:$0xf]
      %v607 = vld [vmem:[#allocation14 + $0x8] sm:$0xf]
      %v608 = vld [vmem:[#allocation14 + $0xc] sm:$0xf]
      %v609 = vld [vmem:[#allocation14 + $0x10] sm:$0xf]
      %v610 = vld [vmem:[#allocation14 + $0x14] sm:$0xf]
      %v611 = vld [vmem:[#allocation14 + $0x18] sm:$0xf]
      %v612 = vld [vmem:[#allocation14 + $0x1c] sm:$0xf]
      %v613 = vld [vmem:[#allocation14 + $0x20] sm:$0xf]
      %v614 = vld [vmem:[#allocation14 + $0x24] sm:$0xf]
      %v615 = vld [vmem:[#allocation14 + $0x28] sm:$0xf]
      %v616 = vld [vmem:[#allocation14 + $0x2c] sm:$0xf]
      %v617 = vld [vmem:[#allocation14 + $0x30] sm:$0xf]
      %v618 = vld [vmem:[#allocation14 + $0x34] sm:$0xf]
      %v619 = vld [vmem:[#allocation14 + $0x38] sm:$0xf]
      %v620 = vld [vmem:[#allocation14 + $0x3c] sm:$0xf]
      %v622 = vperm.slane %v133, 0
      %v640 = vunpack.c.l.b16 %v605
      %v641 = vunpack.c.l.b16 %v606
      %v642 = vunpack.c.l.b16 %v607
      %v643 = vunpack.c.l.b16 %v608
      %v644 = vunpack.c.l.b16 %v609
      %v645 = vunpack.c.l.b16 %v610
      %v646 = vunpack.c.l.b16 %v611
      %v647 = vunpack.c.l.b16 %v612
      %v648 = vunpack.c.l.b16 %v613
      %v649 = vunpack.c.l.b16 %v614
      %v650 = vunpack.c.l.b16 %v615
      %v651 = vunpack.c.l.b16 %v616
      %v652 = vunpack.c.l.b16 %v617
      %v653 = vunpack.c.l.b16 %v618
      %v654 = vunpack.c.l.b16 %v619
      %v655 = vunpack.c.l.b16 %v620
      %v656 = vpack.c.b16 %v641, %v640
      %v657 = vpack.c.b16 %v643, %v642
      %v658 = vpack.c.b16 %v645, %v644
      %v659 = vpack.c.b16 %v647, %v646
      %v660 = vpack.c.b16 %v649, %v648
      %v661 = vpack.c.b16 %v651, %v650
      %v662 = vpack.c.b16 %v653, %v652
      %v663 = vpack.c.b16 %v655, %v654
      %672 = vmatpush.bf16.msra.mxu0 %v663
      %673 = vmatpush.bf16.msra.mxu0 %v662
      %674 = vmatpush.bf16.msra.mxu0 %v661
      %675 = vmatpush.bf16.msra.mxu0 %v660
      %676 = vmatpush.bf16.msra.mxu0 %v659
      %677 = vmatpush.bf16.msra.mxu0 %v658
      %678 = vmatpush.bf16.msra.mxu0 %v657
      %679 = vmatpush.bf16.msra.mxu0 %v656
      %680 = vmatmul.bf16.gmra.mxu0 %v604
      %v681 = vpop.f32.mrf.mxu0
      %v682 = vadd.f32 %v622, %v681
      %v683 = vpop.f32.mrf.mxu0
      %684 = vdwg.mxu0
      %685 = vmax.xlane.f32.xlu0 %v682
      %v686 = vpop.xlane.xlu0 %685
      %vm687 = vcmp.eq.f32.partialorder %v682, %v686
      %v688 = vsel %vm687, %v135, 128
      %v689 = vand.u32 %v688, 65535
      %v690 = vshra.s32 %v688, 16
      %v691 = vcvt.s32.f32 %v689
      %v692 = vcvt.s32.f32 %v690
      %693 = vmin.xlane.f32.xlu0 %v692
      %v694 = vpop.xlane.xlu0 %693
      %vm695 = vcmp.eq.f32.partialorder %v692, %v694
      %v696 = vsel %vm695, %v691, inf
      %697 = vmin.xlane.f32.xlu0 %v696
      %v698 = vpop.xlane.xlu0 %697
      %v699 = vcvt.f32.s32 %v698
      %v700 = vcvt.f32.s32 %v694
      %v701 = vshll.u32 %v700, 16
      %v702 = vadd.s32 %v701, %v699
      %vm703 = vcmp.lt.s32.totalorder %v702, 127
      %v704 = vsel %vm703, %v702, 127
      %vm705 = vcmp.eq.s32.totalorder %v135, %v704
      %v706 = vsel %vm705, 1, 0
      %v707 = vcvt.s32.f32 %v706
      %v708 = vld [vmem:[#allocation10] sm:$0xff]
      %v709 = vld [vmem:[#allocation10 + $0x8] sm:$0xff]
      %v710 = vld [vmem:[#allocation10 + $0x10] sm:$0xff]
      %v711 = vld [vmem:[#allocation10 + $0x18] sm:$0xff]
      %v712 = vld [vmem:[#allocation10 + $0x20] sm:$0xff]
      %v713 = vld [vmem:[#allocation10 + $0x28] sm:$0xff]
      %v714 = vld [vmem:[#allocation10 + $0x30] sm:$0xff]
      %v715 = vld [vmem:[#allocation10 + $0x38] sm:$0xff]
      %v716 = vld [vmem:[#allocation10 + $0x40] sm:$0xff]
      %v717 = vld [vmem:[#allocation10 + $0x48] sm:$0xff]
      %v718 = vld [vmem:[#allocation10 + $0x50] sm:$0xff]
      %v719 = vld [vmem:[#allocation10 + $0x58] sm:$0xff]
      %v720 = vld [vmem:[#allocation10 + $0x60] sm:$0xff]
      %v721 = vld [vmem:[#allocation10 + $0x68] sm:$0xff]
      %v722 = vld [vmem:[#allocation10 + $0x70] sm:$0xff]
      %v723 = vld [vmem:[#allocation10 + $0x78] sm:$0xff]
      %724 = vmatpush.msra.mxu0 %v723
      %725 = vmatpush.msra.mxu0 %v722
      %726 = vmatpush.msra.mxu0 %v721
      %727 = vmatpush.msra.mxu0 %v720
      %728 = vmatpush.msra.mxu0 %v719
      %729 = vmatpush.msra.mxu0 %v718
      %730 = vmatpush.msra.mxu0 %v717
      %731 = vmatpush.msra.mxu0 %v716
      %732 = vmatpush.msra.mxu0 %v715
      %733 = vmatpush.msra.mxu0 %v714
      %734 = vmatpush.msra.mxu0 %v713
      %735 = vmatpush.msra.mxu0 %v712
      %736 = vmatpush.msra.mxu0 %v711
      %737 = vmatpush.msra.mxu0 %v710
      %738 = vmatpush.msra.mxu0 %v709
      %739 = vmatpush.msra.mxu0 %v708
      %740 = vmatmul.f32.gmra.mxu0 %v707
      %v741 = vpop.f32.mrf.mxu0
      %v742 = vadd.f32 0.0, %v741
      %743 = vdwg.mxu0
      %v744 = vmax.f32 %v742, 0.0
      %v745 = vsub.f32 %v682, %v686
      %v746 = vmul.f32 %v745, 1.442695
      %v747 = vpow.pop %v746
      %748 = vadd.xlane.f32.xlu0 %v747
      %v749 = vpop.xlane.xlu0 %748
      %v750 = vlog2.pop %v749
      %v751 = vmul.f32 %v750, 0.6931472
      %v752 = vsub.f32 %v745, %v751
      %s753 = smul.u32 %s139, 8
      %s754 = scalar_lea.vmem [#allocation16], %s753
      %755 = vst [vmem:[%s754] sm:$0xff] %v752
    $region70: #{tpu_custom_call.1} parent=1 // loop_footer
      %s143 = sadd.s32 1, %s139
    $region71: #{tpu_custom_call.1} parent=1 // loop_footer_branch
      %138 = sbr.rel target = $region67
    $region72: #{tpu_custom_call.1} parent=1 // loop_exit
      _
    %756 = vst [vmem:[#allocation2] sm:$0xff] %v144
    %757 = vst [vmem:[#allocation3] sm:$0xff] %v145
    // Predicated region
    $region73: #{tpu_custom_call.1} parent=1 // pred_check
      _
    $region74: #{tpu_custom_call.1} parent=1 // pred_check_branch
      %759 = sbr.rel (0) target = $region76
    $region75: #{tpu_custom_call.1} parent=1 // pred_region
      %761 = vsyncadd [#allocation7], 0
      %s762 = sshll.u32 [#allocation16], 4
      %s763 = int_to_ptr.vmem [resolvable:$true] %s762
      %s764 = sshll.u32 %s9, 4
      %s765 = int_to_ptr.hbm [resolvable:$true] %s764
      %770 = dma.vmem_to_hbm [thread:$0]  %s763, 1024, %s765, [#allocation7], 128, 128, 8
    $region76: #{tpu_custom_call.1} parent=1 // pred_fallthru
      _
    // Predicated region
    $region77: #{tpu_custom_call.1} parent=1 // pred_check
      _
    $region78: #{tpu_custom_call.1} parent=1 // pred_check_branch
      %772 = sbr.rel (0) target = $region80
    $region79: #{tpu_custom_call.1} parent=1 // pred_region
      %774 = dma.done [#allocation7], 1024
    $region80: #{tpu_custom_call.1} parent=1 // pred_fallthru
      _
    %775 = vsyncpa [#allocation6], 1
    %776 = vsyncpa [#allocation9], 1
    %777 = vsyncpa [#allocation12], 1
    %778 = vsyncpa [#allocation15], 1
    %779 = vsyncpa [#allocation7], 1

</llo_original>
